<compile_context>
chip_gen: v6e
topology: v6e:2x2x1
jax: 0.10.0
libtpu: 0.0.40
codegen_flags: <defaults>
</compile_context>

<pallas_src>
import jax
import jax.numpy as jnp
from jax import lax
from jax.experimental import pallas as pl
from jax.experimental.pallas import tpu as pltpu


def reward_mlp_kernel(x_ref, *refs):
    """Fused MLP in transposed (feature-major) compute layout.

    x_ref : (TB, state_dim)   -- natural batch-major tile (no wrapper transpose)
    refs  : [w1_t, b1, w2_t, b2, w3_t, b3, out_ref]
      wI_t : (out_i, in_i)    -- transposed weights, VMEM-resident across the grid
      bI   : (out_i, 1)
      out  : (1, TB)          -- lane-dense output tile
    """
    out_ref = refs[-1]
    wb_refs = refs[:-1]
    n_layers = len(wb_refs) // 2

    # Layer 1: h1_t = w1^T @ x^T == (x @ w1)^T, expressed as an NT matmul
    # (contract the last dim of both operands) so x never needs a transpose.
    w1_t = wb_refs[0][...]
    b1 = wb_refs[1][...]
    h = lax.dot_general(
        w1_t, x_ref[...],
        dimension_numbers=(((1,), (1,)), ((), ())),
        preferred_element_type=jnp.float32,
    ) + b1
    if n_layers > 1:
        h = jnp.maximum(h, 0.0)

    # Remaining layers stay feature-major: (out, in) @ (in, TB).
    for li in range(1, n_layers):
        w = wb_refs[2 * li][...]
        b = wb_refs[2 * li + 1][...]
        h = jnp.dot(w, h, preferred_element_type=jnp.float32) + b
        if li < n_layers - 1:
            h = jnp.maximum(h, 0.0)  # ReLU on hidden layers only

    out_ref[...] = h.astype(out_ref.dtype)


def init_linear(key, fan_in, fan_out):
    """PyTorch-style uniform(-1/sqrt(fan_in), 1/sqrt(fan_in)) init. W stored (in, out)."""
    kw, kb = jax.random.split(key)
    bound = 1.0 / float(fan_in) ** 0.5
    w = jax.random.uniform(kw, (fan_in, fan_out), jnp.float32, -bound, bound)
    b = jax.random.uniform(kb, (fan_out,), jnp.float32, -bound, bound)
    return w, b


def init_reward_params(key, state_dim, hidden_dim=256, n_hidden=2):
    dims = [state_dim, *([hidden_dim] * n_hidden), 1]
    keys = jax.random.split(key, len(dims) - 1)
    params = []
    for k, din, dout in zip(keys, dims[:-1], dims[1:]):
        w, b = init_linear(k, din, dout)
        params.extend([w, b])
    return params  # [w1, b1, w2, b2, w3, b3]


@jax.jit
def reward_forward(state, params):
    """state: (B, state_dim) float32 -> (B, 1) float32."""
    B, state_dim = state.shape
    n_layers = len(params) // 2

    # Batch tile: at least one full lane width (128), up to 1024 rows per grid step.
    TB = min(1024, pl.cdiv(B, 128) * 128)
    Bp = pl.cdiv(B, TB) * TB
    num_tiles = Bp // TB

    x = state
    if Bp != B:
        x = jnp.pad(x, ((0, Bp - B), (0, 0)))  # padded rows sliced off after the kernel

    kernel_inputs = [x]
    in_specs = [pl.BlockSpec((TB, state_dim), lambda i: (i, 0))]
    for li in range(n_layers):
        w_t = params[2 * li].T                   # (out, in)
        b_c = params[2 * li + 1].reshape(-1, 1)  # (out, 1)
        kernel_inputs.extend([w_t, b_c])
        in_specs.append(pl.BlockSpec(w_t.shape, lambda i: (0, 0)))  # resident weights
        in_specs.append(pl.BlockSpec(b_c.shape, lambda i: (0, 0)))

    out = pl.pallas_call(
        reward_mlp_kernel,
        out_shape=jax.ShapeDtypeStruct((1, Bp), jnp.float32),
        grid=(num_tiles,),
        in_specs=in_specs,
        out_specs=pl.BlockSpec((1, TB), lambda i: (0, i)),
        compiler_params=pltpu.CompilerParams(
            dimension_semantics=("parallel",)),
    )(*kernel_inputs)

    return out[0, :B].reshape(B, 1)


def reward_predict(state, params):
    """Mirrors RewardModel.predict: forward(state) - 1.0."""
    return reward_forward(state, params) - 1.0


def reward_reference(state, params):
    """Pure-JAX reference mirroring the PyTorch forward."""
    h = state
    n_layers = len(params) // 2
    for li in range(n_layers):
        w, b = params[2 * li], params[2 * li + 1]
        h = h @ w + b
        if li < n_layers - 1:
            h = jnp.maximum(h, 0.0)
    return h  # (B, 1)


if __name__ == "__main__":
    # Small shapes consistent with the module (dims = [state_dim, hidden, hidden, 1]).
    batch = 8
    state_dim = 16
    hidden_dim = 32
    n_hidden = 2

    key = jax.random.PRNGKey(0)
    kp, ks, ks2 = jax.random.split(key, 3)
    params = init_reward_params(kp, state_dim, hidden_dim, n_hidden)
    state = jax.random.normal(ks, (batch, state_dim), jnp.float32)

    r = reward_forward(state, params)
    jax.block_until_ready(r)
    r_ref = reward_reference(state, params)
    assert r.shape == (batch, 1), r.shape
    assert jnp.allclose(r, r_ref, atol=1e-4, rtol=1e-4), (r, r_ref)

    p = reward_predict(state, params)
    jax.block_until_ready(p)
    assert jnp.allclose(p, r_ref - 1.0, atol=1e-4, rtol=1e-4)

    # Secondary sanity check: multi-tile grid + ragged batch (exercises padding path).
    state_big = jax.random.normal(ks2, (2304, state_dim), jnp.float32)
    r_big = reward_forward(state_big, params)
    jax.block_until_ready(r_big)
    assert r_big.shape == (2304, 1)
    assert jnp.allclose(r_big, reward_reference(state_big, params), atol=1e-4, rtol=1e-4)

    print("KERNEL_OK")
</pallas_src>

<mosaic_0001>
module attributes {stable_mosaic.version = 11 : i64} {
  func.func @reward_mlp_kernel(%arg0: i32, %arg1: memref<128x16xf32, #tpu.memory_space<vmem>>, %arg2: memref<32x16xf32, #tpu.memory_space<vmem>>, %arg3: memref<32x1xf32, #tpu.memory_space<vmem>>, %arg4: memref<32x32xf32, #tpu.memory_space<vmem>>, %arg5: memref<32x1xf32, #tpu.memory_space<vmem>>, %arg6: memref<1x32xf32, #tpu.memory_space<vmem>>, %arg7: memref<1x1xf32, #tpu.memory_space<vmem>>, %arg8: memref<1x128xf32, #tpu.memory_space<vmem>>) attributes {dimension_semantics = [#tpu.dimension_semantics<parallel>], iteration_bounds = array<i64: 1>, scalar_prefetch = 0 : i64, scratch_operands = 0 : i64, tpu.core_type = #tpu.core_type<tc>, window_params = [{transform_indices = @transform_0, window_bounds = array<i64: 128, 16>}, {pipeline_mode = #tpu.pipeline_mode<synchronous>, transform_indices = @transform_1, window_bounds = array<i64: 32, 16>}, {pipeline_mode = #tpu.pipeline_mode<synchronous>, transform_indices = @transform_2, window_bounds = array<i64: 32, 1>}, {pipeline_mode = #tpu.pipeline_mode<synchronous>, transform_indices = @transform_3, window_bounds = array<i64: 32, 32>}, {pipeline_mode = #tpu.pipeline_mode<synchronous>, transform_indices = @transform_4, window_bounds = array<i64: 32, 1>}, {pipeline_mode = #tpu.pipeline_mode<synchronous>, transform_indices = @transform_5, window_bounds = array<i64: 1, 32>}, {pipeline_mode = #tpu.pipeline_mode<synchronous>, transform_indices = @transform_6, window_bounds = array<i64: 1, 1>}, {transform_indices = @transform_7, window_bounds = array<i64: 1, 128>}]} {
    %c0 = arith.constant 0 : index
    %c0_0 = arith.constant 0 : index
    %0 = vector.load %arg2[%c0, %c0_0] : memref<32x16xf32, #tpu.memory_space<vmem>>, vector<32x16xf32>
    %c0_1 = arith.constant 0 : index
    %c0_2 = arith.constant 0 : index
    %1 = vector.load %arg3[%c0_1, %c0_2] : memref<32x1xf32, #tpu.memory_space<vmem>>, vector<32x1xf32>
    %c0_3 = arith.constant 0 : index
    %c0_4 = arith.constant 0 : index
    %2 = vector.load %arg1[%c0_3, %c0_4] : memref<128x16xf32, #tpu.memory_space<vmem>>, vector<128x16xf32>
    %cst = arith.constant dense<0.000000e+00> : vector<32x128xf32>
    %3 = tpu.matmul %0, %2, %cst {dimension_numbers = #tpu.dot_dimension_numbers<[1], [1], [0], [0], [0, 0, 1, 0], [], []>} : vector<32x16xf32>, vector<128x16xf32>, vector<32x128xf32> -> vector<32x128xf32>
    %4 = vector.broadcast %1 : vector<32x1xf32> to vector<32x128xf32>
    %5 = arith.addf %3, %4 : vector<32x128xf32>
    %cst_5 = arith.constant 0.000000e+00 : f32
    %6 = vector.broadcast %cst_5 : f32 to vector<32x128xf32>
    %7 = arith.maximumf %5, %6 : vector<32x128xf32>
    %c0_6 = arith.constant 0 : index
    %c0_7 = arith.constant 0 : index
    %8 = vector.load %arg4[%c0_6, %c0_7] : memref<32x32xf32, #tpu.memory_space<vmem>>, vector<32x32xf32>
    %c0_8 = arith.constant 0 : index
    %c0_9 = arith.constant 0 : index
    %9 = vector.load %arg5[%c0_8, %c0_9] : memref<32x1xf32, #tpu.memory_space<vmem>>, vector<32x1xf32>
    %cst_10 = arith.constant dense<0.000000e+00> : vector<32x128xf32>
    %10 = tpu.matmul %8, %7, %cst_10 {dimension_numbers = #tpu.dot_dimension_numbers<[1], [0], [0], [1], [0, 0, 1, 1], [], []>} : vector<32x32xf32>, vector<32x128xf32>, vector<32x128xf32> -> vector<32x128xf32>
    %11 = vector.broadcast %9 : vector<32x1xf32> to vector<32x128xf32>
    %12 = arith.addf %10, %11 : vector<32x128xf32>
    %cst_11 = arith.constant 0.000000e+00 : f32
    %13 = vector.broadcast %cst_11 : f32 to vector<32x128xf32>
    %14 = arith.maximumf %12, %13 : vector<32x128xf32>
    %c0_12 = arith.constant 0 : index
    %c0_13 = arith.constant 0 : index
    %15 = vector.load %arg6[%c0_12, %c0_13] : memref<1x32xf32, #tpu.memory_space<vmem>>, vector<1x32xf32>
    %c0_14 = arith.constant 0 : index
    %c0_15 = arith.constant 0 : index
    %16 = vector.load %arg7[%c0_14, %c0_15] : memref<1x1xf32, #tpu.memory_space<vmem>>, vector<1x1xf32>
    %cst_16 = arith.constant dense<0.000000e+00> : vector<1x128xf32>
    %17 = tpu.matmul %15, %14, %cst_16 {dimension_numbers = #tpu.dot_dimension_numbers<[1], [0], [0], [1], [0, 0, 1, 1], [], []>} : vector<1x32xf32>, vector<32x128xf32>, vector<1x128xf32> -> vector<1x128xf32>
    %18 = vector.broadcast %16 : vector<1x1xf32> to vector<1x128xf32>
    %19 = arith.addf %17, %18 : vector<1x128xf32>
    %c0_17 = arith.constant 0 : index
    %c0_18 = arith.constant 0 : index
    %20 = vector.load %arg8[%c0_17, %c0_18] : memref<1x128xf32, #tpu.memory_space<vmem>>, vector<1x128xf32>
    tpu.vector_store %arg8[%c0_17, %c0_18], %19 {strides = array<i32>} : memref<1x128xf32, #tpu.memory_space<vmem>>, vector<1x128xf32>,
    return
  }
  func.func @transform_0(%arg0: i32) -> (i32, i32) {
    %c0_i32 = arith.constant 0 : i32
    %c0_i32_0 = arith.constant 0 : i32
    return %arg0, %c0_i32 : i32, i32
  }
  func.func @transform_1(%arg0: i32) -> (i32, i32) {
    %c0_i32 = arith.constant 0 : i32
    %c0_i32_0 = arith.constant 0 : i32
    %c0_i32_1 = arith.constant 0 : i32
    return %c0_i32, %c0_i32_0 : i32, i32
  }
  func.func @transform_2(%arg0: i32) -> (i32, i32) {
    %c0_i32 = arith.constant 0 : i32
    %c0_i32_0 = arith.constant 0 : i32
    %c0_i32_1 = arith.constant 0 : i32
    return %c0_i32, %c0_i32_0 : i32, i32
  }
  func.func @transform_3(%arg0: i32) -> (i32, i32) {
    %c0_i32 = arith.constant 0 : i32
    %c0_i32_0 = arith.constant 0 : i32
    %c0_i32_1 = arith.constant 0 : i32
    return %c0_i32, %c0_i32_0 : i32, i32
  }
  func.func @transform_4(%arg0: i32) -> (i32, i32) {
    %c0_i32 = arith.constant 0 : i32
    %c0_i32_0 = arith.constant 0 : i32
    %c0_i32_1 = arith.constant 0 : i32
    return %c0_i32, %c0_i32_0 : i32, i32
  }
  func.func @transform_5(%arg0: i32) -> (i32, i32) {
    %c0_i32 = arith.constant 0 : i32
    %c0_i32_0 = arith.constant 0 : i32
    %c0_i32_1 = arith.constant 0 : i32
    return %c0_i32, %c0_i32_0 : i32, i32
  }
  func.func @transform_6(%arg0: i32) -> (i32, i32) {
    %c0_i32 = arith.constant 0 : i32
    %c0_i32_0 = arith.constant 0 : i32
    %c0_i32_1 = arith.constant 0 : i32
    return %c0_i32, %c0_i32_0 : i32, i32
  }
  func.func @transform_7(%arg0: i32) -> (i32, i32) {
    %c0_i32 = arith.constant 0 : i32
    %c0_i32_0 = arith.constant 0 : i32
    return %c0_i32, %arg0 : i32, i32
  }
}

</mosaic_0001>

<llo_original>
// kernel: reward_forward.1
$region0: #{reward_forward.1}
  #allocation0 [shape = 'u32[]', space=smem, size = 0x4, offset = 0x4, fixed_abs, tag = 'smem constant byte address 0x4 - core index']
  #allocation1 [shape = 'u32[144,128]{1,0:T(1,128)}', space=vmem, size = 0x12000, scoped, tag = 'internal scratch']
  #allocation2 [shape = 'f32[1,1]{1,0:T(1,128)S(1)}', space=vmem, size = 0x200, scoped, tag = 'scoped memory for reward_forward.1']
  %s0 = inlined_call_operand.vmem [shape: f32[128,16], index: 0, kind: input, shape index: {}]
  %s1 = inlined_call_operand.vmem [shape: f32[32,16], index: 1, kind: input, shape index: {}]
  %s2 = inlined_call_operand.vmem [shape: f32[32,1], index: 2, kind: input, shape index: {}]
  %s3 = inlined_call_operand.vmem [shape: f32[32,32], index: 3, kind: input, shape index: {}]
  %s4 = inlined_call_operand.vmem [shape: f32[32,1], index: 4, kind: input, shape index: {}]
  %s5 = inlined_call_operand.vmem [shape: f32[1,32], index: 5, kind: input, shape index: {}]
  %s6 = inlined_call_operand.<no memory space> [shape: f32[1,1], index: 6, kind: input, shape index: {}]
  %s7 = inlined_call_operand.vmem [shape: f32[1,128], index: 7, kind: output, shape index: {}]
  %s8 = sld [smem:[#allocation0]]
  $region38: #{reward_forward.1} parent=0
    _
  %s10 = ssub.s32 1, %s8
  %s11 = scalar_select 0, %s10, %s8
  %v12 = vstv %s6
  %13 = vst [vmem:[#allocation2] sm:$0x1] %v12
  // Predicated region
  $region2: #{reward_forward.1} parent=0 // pred_check
    _
  $region3: #{reward_forward.1} parent=0 // pred_check_branch
    %15 = sbr.rel (0) target = $region5
  $region4: #{reward_forward.1} parent=0 // pred_region
    _
  $region5: #{reward_forward.1} parent=0 // pred_fallthru
    _
  // Predicated region
  $region6: #{reward_forward.1} parent=0 // pred_check
    _
  $region7: #{reward_forward.1} parent=0 // pred_check_branch
    %17 = sbr.rel (0) target = $region9
  $region8: #{reward_forward.1} parent=0 // pred_region
    _
  $region9: #{reward_forward.1} parent=0 // pred_fallthru
    _
  // Predicated region
  $region10: #{reward_forward.1} parent=0 // pred_check
    _
  $region11: #{reward_forward.1} parent=0 // pred_check_branch
    %19 = sbr.rel (0) target = $region13
  $region12: #{reward_forward.1} parent=0 // pred_region
    _
  $region13: #{reward_forward.1} parent=0 // pred_fallthru
    _
  // Predicated region
  $region14: #{reward_forward.1} parent=0 // pred_check
    _
  $region15: #{reward_forward.1} parent=0 // pred_check_branch
    %21 = sbr.rel (0) target = $region17
  $region16: #{reward_forward.1} parent=0 // pred_region
    _
  $region17: #{reward_forward.1} parent=0 // pred_fallthru
    _
  // Predicated region
  $region18: #{reward_forward.1} parent=0 // pred_check
    _
  $region19: #{reward_forward.1} parent=0 // pred_check_branch
    %23 = sbr.rel (0) target = $region21
  $region20: #{reward_forward.1} parent=0 // pred_region
    _
  $region21: #{reward_forward.1} parent=0 // pred_fallthru
    _
  // Predicated region
  $region22: #{reward_forward.1} parent=0 // pred_check
    _
  $region23: #{reward_forward.1} parent=0 // pred_check_branch
    %25 = sbr.rel (0) target = $region25
  $region24: #{reward_forward.1} parent=0 // pred_region
    _
  $region25: #{reward_forward.1} parent=0 // pred_fallthru
    _
  // Predicated region
  $region26: #{reward_forward.1} parent=0 // pred_check
    _
  $region27: #{reward_forward.1} parent=0 // pred_check_branch
    %27 = sbr.rel (0) target = $region29
  $region28: #{reward_forward.1} parent=0 // pred_region
    _
  $region29: #{reward_forward.1} parent=0 // pred_fallthru
    _
  %v28 = vld [vmem:[%s1] sm:$0xff]
  %v29 = vld [vmem:[%s1 + $0x8] sm:$0xff]
  %v30 = vld [vmem:[%s1 + $0x10] sm:$0xff]
  %v31 = vld [vmem:[%s1 + $0x18] sm:$0xff]
  %v32 = vld [vmem:[%s2] sm:$0xff]
  %v33 = vld [vmem:[%s2 + $0x8] sm:$0xff]
  %v34 = vld [vmem:[%s2 + $0x10] sm:$0xff]
  %v35 = vld [vmem:[%s2 + $0x18] sm:$0xff]
  %v36 = vld [vmem:[%s0] sm:$0xff]
  %v37 = vld [vmem:[%s0 + $0x8] sm:$0xff]
  %v38 = vld [vmem:[%s0 + $0x10] sm:$0xff]
  %v39 = vld [vmem:[%s0 + $0x18] sm:$0xff]
  %v40 = vld [vmem:[%s0 + $0x20] sm:$0xff]
  %v41 = vld [vmem:[%s0 + $0x28] sm:$0xff]
  %v42 = vld [vmem:[%s0 + $0x30] sm:$0xff]
  %v43 = vld [vmem:[%s0 + $0x38] sm:$0xff]
  %v44 = vld [vmem:[%s0 + $0x40] sm:$0xff]
  %v45 = vld [vmem:[%s0 + $0x48] sm:$0xff]
  %v46 = vld [vmem:[%s0 + $0x50] sm:$0xff]
  %v47 = vld [vmem:[%s0 + $0x58] sm:$0xff]
  %v48 = vld [vmem:[%s0 + $0x60] sm:$0xff]
  %v49 = vld [vmem:[%s0 + $0x68] sm:$0xff]
  %v50 = vld [vmem:[%s0 + $0x70] sm:$0xff]
  %v51 = vld [vmem:[%s0 + $0x78] sm:$0xff]
  %53 = vset.pattern.permute.xlu0 0
  %54 = vperm.xlu0 %53, %v32
  %v55 = vpop.permute.xlu0 %54
  %58 = vset.pattern.permute.xlu0 0
  %59 = vperm.xlu0 %58, %v33
  %v60 = vpop.permute.xlu0 %59
  %63 = vset.pattern.permute.xlu0 0
  %64 = vperm.xlu0 %63, %v34
  %v65 = vpop.permute.xlu0 %64
  %68 = vset.pattern.permute.xlu0 0
  %69 = vperm.xlu0 %68, %v35
  %v70 = vpop.permute.xlu0 %69
  %vm72 = vcmask 130048
  %v74 = vsel %vm72, %v28, 0
  %v77 = vsel %vm72, %v29, 0
  %v80 = vsel %vm72, %v30, 0
  %v83 = vsel %vm72, %v31, 0
  %v86 = vsel %vm72, %v36, 0
  %v89 = vsel %vm72, %v37, 0
  %v92 = vsel %vm72, %v38, 0
  %v95 = vsel %vm72, %v39, 0
  %v98 = vsel %vm72, %v40, 0
  %v101 = vsel %vm72, %v41, 0
  %v104 = vsel %vm72, %v42, 0
  %v107 = vsel %vm72, %v43, 0
  %v110 = vsel %vm72, %v44, 0
  %v113 = vsel %vm72, %v45, 0
  %v116 = vsel %vm72, %v46, 0
  %v119 = vsel %vm72, %v47, 0
  %v122 = vsel %vm72, %v48, 0
  %v125 = vsel %vm72, %v49, 0
  %v128 = vsel %vm72, %v50, 0
  %v131 = vsel %vm72, %v51, 0
  %133 = vmatprep.subr.mxu0 0.0
  %134 = vmatpush1.xpose.msra.mxu0 %v131
  %135 = vmatprep.subr.mxu0 0.0
  %136 = vmatpush1.xpose.msra.mxu0 %v128
  %137 = vmatprep.subr.mxu0 0.0
  %138 = vmatpush1.xpose.msra.mxu0 %v125
  %139 = vmatprep.subr.mxu0 0.0
  %140 = vmatpush1.xpose.msra.mxu0 %v122
  %141 = vmatprep.subr.mxu0 0.0
  %142 = vmatpush1.xpose.msra.mxu0 %v119
  %143 = vmatprep.subr.mxu0 0.0
  %144 = vmatpush1.xpose.msra.mxu0 %v116
  %145 = vmatprep.subr.mxu0 0.0
  %146 = vmatpush1.xpose.msra.mxu0 %v113
  %147 = vmatprep.subr.mxu0 0.0
  %148 = vmatpush1.xpose.msra.mxu0 %v110
  %149 = vmatprep.subr.mxu0 0.0
  %150 = vmatpush1.xpose.msra.mxu0 %v107
  %151 = vmatprep.subr.mxu0 0.0
  %152 = vmatpush1.xpose.msra.mxu0 %v104
  %153 = vmatprep.subr.mxu0 0.0
  %154 = vmatpush1.xpose.msra.mxu0 %v101
  %155 = vmatprep.subr.mxu0 0.0
  %156 = vmatpush1.xpose.msra.mxu0 %v98
  %157 = vmatprep.subr.mxu0 0.0
  %158 = vmatpush1.xpose.msra.mxu0 %v95
  %159 = vmatprep.subr.mxu0 0.0
  %160 = vmatpush1.xpose.msra.mxu0 %v92
  %161 = vmatprep.subr.mxu0 0.0
  %162 = vmatpush1.xpose.msra.mxu0 %v89
  %163 = vmatprep.subr.mxu0 0.0
  %164 = vmatpush1.xpose.msra.mxu0 %v86
  %165 = vmatprep.subr.mxu0 0.0
  %166 = vmatpush2.xpose.msra.mxu0 0.0
  %167 = vmatprep.subr.mxu0 0.0
  %168 = vmatpush2.xpose.msra.mxu0 0.0
  %169 = vmatprep.subr.mxu0 0.0
  %170 = vmatpush2.xpose.msra.mxu0 0.0
  %171 = vmatprep.subr.mxu0 0.0
  %172 = vmatpush2.xpose.msra.mxu0 0.0
  %173 = vmatprep.subr.mxu0 0.0
  %174 = vmatpush2.xpose.msra.mxu0 0.0
  %175 = vmatprep.subr.mxu0 0.0
  %176 = vmatpush2.xpose.msra.mxu0 0.0
  %177 = vmatprep.subr.mxu0 0.0
  %178 = vmatpush2.xpose.msra.mxu0 0.0
  %179 = vmatprep.subr.mxu0 0.0
  %180 = vmatpush2.xpose.msra.mxu0 0.0
  %181 = vmatprep.subr.mxu0 0.0
  %182 = vmatpush2.xpose.msra.mxu0 0.0
  %183 = vmatprep.subr.mxu0 0.0
  %184 = vmatpush2.xpose.msra.mxu0 0.0
  %185 = vmatprep.subr.mxu0 0.0
  %186 = vmatpush2.xpose.msra.mxu0 0.0
  %187 = vmatprep.subr.mxu0 0.0
  %188 = vmatpush2.xpose.msra.mxu0 0.0
  %189 = vmatprep.subr.mxu0 0.0
  %190 = vmatpush2.xpose.msra.mxu0 0.0
  %191 = vmatprep.subr.mxu0 0.0
  %192 = vmatpush2.xpose.msra.mxu0 0.0
  %193 = vmatprep.subr.mxu0 0.0
  %194 = vmatpush2.xpose.msra.mxu0 0.0
  %195 = vmatprep.subr.mxu0 0.0
  %196 = vmatpush2.xpose.msra.mxu0 0.0
  %197 = vmatprep.mubr.f32.mxu0 0.0
  %198 = vmatmul.mubr.f32.gmra.mxu0 %v74
  %v199 = vpop.f32.mrf.mxu0
  %v200 = vadd.f32 %v55, %v199
  %v201 = vpop.f32.mrf.mxu0
  %202 = vmatprep.mubr.f32.mxu0 0.0
  %203 = vmatmul.mubr.f32.gmra.mxu0 %v77
  %v204 = vpop.f32.mrf.mxu0
  %v205 = vadd.f32 %v60, %v204
  %v206 = vpop.f32.mrf.mxu0
  %207 = vmatprep.mubr.f32.mxu0 0.0
  %208 = vmatmul.mubr.f32.gmra.mxu0 %v80
  %v209 = vpop.f32.mrf.mxu0
  %v210 = vadd.f32 %v65, %v209
  %v211 = vpop.f32.mrf.mxu0
  %212 = vmatprep.mubr.f32.mxu0 0.0
  %213 = vmatmul.mubr.f32.gmra.mxu0 %v83
  %v214 = vpop.f32.mrf.mxu0
  %v215 = vadd.f32 %v70, %v214
  %v216 = vpop.f32.mrf.mxu0
  %217 = vdwg.mxu0
  %v218 = vmax.f32 %v200, 0.0
  %v219 = vmax.f32 %v205, 0.0
  %v220 = vmax.f32 %v210, 0.0
  %v221 = vmax.f32 %v215, 0.0
  %v222 = vld [vmem:[%s3] sm:$0xff]
  %v223 = vld [vmem:[%s3 + $0x8] sm:$0xff]
  %v224 = vld [vmem:[%s3 + $0x10] sm:$0xff]
  %v225 = vld [vmem:[%s3 + $0x18] sm:$0xff]
  %v226 = vld [vmem:[%s4] sm:$0xff]
  %v227 = vld [vmem:[%s4 + $0x8] sm:$0xff]
  %v228 = vld [vmem:[%s4 + $0x10] sm:$0xff]
  %v229 = vld [vmem:[%s4 + $0x18] sm:$0xff]
  %231 = vset.pattern.permute.xlu0 0
  %232 = vperm.xlu0 %231, %v226
  %v233 = vpop.permute.xlu0 %232
  %236 = vset.pattern.permute.xlu0 0
  %237 = vperm.xlu0 %236, %v227
  %v238 = vpop.permute.xlu0 %237
  %241 = vset.pattern.permute.xlu0 0
  %242 = vperm.xlu0 %241, %v228
  %v243 = vpop.permute.xlu0 %242
  %246 = vset.pattern.permute.xlu0 0
  %247 = vperm.xlu0 %246, %v229
  %v248 = vpop.permute.xlu0 %247
  %vm250 = vcmask 261120
  %v252 = vsel %vm250, %v222, 0
  %v255 = vsel %vm250, %v223, 0
  %v258 = vsel %vm250, %v224, 0
  %v261 = vsel %vm250, %v225, 0
  %263 = vmatprep.subr.mxu0 0.0
  %264 = vmatpush1.msra.mxu0 0.0
  %265 = vmatprep.subr.mxu0 0.0
  %266 = vmatpush1.msra.mxu0 0.0
  %267 = vmatprep.subr.mxu0 0.0
  %268 = vmatpush1.msra.mxu0 0.0
  %269 = vmatprep.subr.mxu0 0.0
  %270 = vmatpush1.msra.mxu0 0.0
  %271 = vmatprep.subr.mxu0 0.0
  %272 = vmatpush1.msra.mxu0 0.0
  %273 = vmatprep.subr.mxu0 0.0
  %274 = vmatpush1.msra.mxu0 0.0
  %275 = vmatprep.subr.mxu0 0.0
  %276 = vmatpush1.msra.mxu0 0.0
  %277 = vmatprep.subr.mxu0 0.0
  %278 = vmatpush1.msra.mxu0 0.0
  %279 = vmatprep.subr.mxu0 0.0
  %280 = vmatpush1.msra.mxu0 0.0
  %281 = vmatprep.subr.mxu0 0.0
  %282 = vmatpush1.msra.mxu0 0.0
  %283 = vmatprep.subr.mxu0 0.0
  %284 = vmatpush1.msra.mxu0 0.0
  %285 = vmatprep.subr.mxu0 0.0
  %286 = vmatpush1.msra.mxu0 0.0
  %287 = vmatprep.subr.mxu0 0.0
  %288 = vmatpush1.msra.mxu0 %v221
  %289 = vmatprep.subr.mxu0 0.0
  %290 = vmatpush1.msra.mxu0 %v220
  %291 = vmatprep.subr.mxu0 0.0
  %292 = vmatpush1.msra.mxu0 %v219
  %293 = vmatprep.subr.mxu0 0.0
  %294 = vmatpush1.msra.mxu0 %v218
  %295 = vmatprep.subr.mxu0 0.0
  %296 = vmatpush2.msra.mxu0 0.0
  %297 = vmatprep.subr.mxu0 0.0
  %298 = vmatpush2.msra.mxu0 0.0
  %299 = vmatprep.subr.mxu0 0.0
  %300 = vmatpush2.msra.mxu0 0.0
  %301 = vmatprep.subr.mxu0 0.0
  %302 = vmatpush2.msra.mxu0 0.0
  %303 = vmatprep.subr.mxu0 0.0
  %304 = vmatpush2.msra.mxu0 0.0
  %305 = vmatprep.subr.mxu0 0.0
  %306 = vmatpush2.msra.mxu0 0.0
  %307 = vmatprep.subr.mxu0 0.0
  %308 = vmatpush2.msra.mxu0 0.0
  %309 = vmatprep.subr.mxu0 0.0
  %310 = vmatpush2.msra.mxu0 0.0
  %311 = vmatprep.subr.mxu0 0.0
  %312 = vmatpush2.msra.mxu0 0.0
  %313 = vmatprep.subr.mxu0 0.0
  %314 = vmatpush2.msra.mxu0 0.0
  %315 = vmatprep.subr.mxu0 0.0
  %316 = vmatpush2.msra.mxu0 0.0
  %317 = vmatprep.subr.mxu0 0.0
  %318 = vmatpush2.msra.mxu0 0.0
  %319 = vmatprep.subr.mxu0 0.0
  %320 = vmatpush2.msra.mxu0 0.0
  %321 = vmatprep.subr.mxu0 0.0
  %322 = vmatpush2.msra.mxu0 0.0
  %323 = vmatprep.subr.mxu0 0.0
  %324 = vmatpush2.msra.mxu0 0.0
  %325 = vmatprep.subr.mxu0 0.0
  %326 = vmatpush2.msra.mxu0 0.0
  %327 = vmatprep.mubr.f32.mxu0 0.0
  %328 = vmatmul.mubr.f32.gmra.mxu0 %v252
  %v329 = vpop.f32.mrf.mxu0
  %v330 = vadd.f32 %v233, %v329
  %v331 = vpop.f32.mrf.mxu0
  %332 = vmatprep.mubr.f32.mxu0 0.0
  %333 = vmatmul.mubr.f32.gmra.mxu0 %v255
  %v334 = vpop.f32.mrf.mxu0
  %v335 = vadd.f32 %v238, %v334
  %v336 = vpop.f32.mrf.mxu0
  %337 = vmatprep.mubr.f32.mxu0 0.0
  %338 = vmatmul.mubr.f32.gmra.mxu0 %v258
  %v339 = vpop.f32.mrf.mxu0
  %v340 = vadd.f32 %v243, %v339
  %v341 = vpop.f32.mrf.mxu0
  %342 = vmatprep.mubr.f32.mxu0 0.0
  %343 = vmatmul.mubr.f32.gmra.mxu0 %v261
  %v344 = vpop.f32.mrf.mxu0
  %v345 = vadd.f32 %v248, %v344
  %v346 = vpop.f32.mrf.mxu0
  %347 = vdwg.mxu0
  %v348 = vmax.f32 %v330, 0.0
  %v349 = vmax.f32 %v335, 0.0
  %v350 = vmax.f32 %v340, 0.0
  %v351 = vmax.f32 %v345, 0.0
  %v352 = vld [vmem:[%s5] sm:$0x1]
  %v353 = vld [vmem:[#allocation2] sm:$0x1]
  %355 = vset.pattern.permute.xlu0 0
  %356 = vperm.xlu0 %355, %v353
  %v357 = vpop.permute.xlu0 %356
  %v359 = vlaneseq
  %v360 = vshrl.u32 %v359, 7
  %v361 = vsub.s32 0, %v360
  %v362 = vrot.slane %v357, %v361
  %v364 = vsel %vm250, %v352, 0
  %366 = vmatprep.subr.mxu0 0.0
  %367 = vmatpush1.msra.mxu0 0.0
  %368 = vmatprep.subr.mxu0 0.0
  %369 = vmatpush1.msra.mxu0 0.0
  %370 = vmatprep.subr.mxu0 0.0
  %371 = vmatpush1.msra.mxu0 0.0
  %372 = vmatprep.subr.mxu0 0.0
  %373 = vmatpush1.msra.mxu0 0.0
  %374 = vmatprep.subr.mxu0 0.0
  %375 = vmatpush1.msra.mxu0 0.0
  %376 = vmatprep.subr.mxu0 0.0
  %377 = vmatpush1.msra.mxu0 0.0
  %378 = vmatprep.subr.mxu0 0.0
  %379 = vmatpush1.msra.mxu0 0.0
  %380 = vmatprep.subr.mxu0 0.0
  %381 = vmatpush1.msra.mxu0 0.0
  %382 = vmatprep.subr.mxu0 0.0
  %383 = vmatpush1.msra.mxu0 0.0
  %384 = vmatprep.subr.mxu0 0.0
  %385 = vmatpush1.msra.mxu0 0.0
  %386 = vmatprep.subr.mxu0 0.0
  %387 = vmatpush1.msra.mxu0 0.0
  %388 = vmatprep.subr.mxu0 0.0
  %389 = vmatpush1.msra.mxu0 0.0
  %390 = vmatprep.subr.mxu0 0.0
  %391 = vmatpush1.msra.mxu0 %v351
  %392 = vmatprep.subr.mxu0 0.0
  %393 = vmatpush1.msra.mxu0 %v350
  %394 = vmatprep.subr.mxu0 0.0
  %395 = vmatpush1.msra.mxu0 %v349
  %396 = vmatprep.subr.mxu0 0.0
  %397 = vmatpush1.msra.mxu0 %v348
  %398 = vmatprep.subr.mxu0 0.0
  %399 = vmatpush2.msra.mxu0 0.0
  %400 = vmatprep.subr.mxu0 0.0
  %401 = vmatpush2.msra.mxu0 0.0
  %402 = vmatprep.subr.mxu0 0.0
  %403 = vmatpush2.msra.mxu0 0.0
  %404 = vmatprep.subr.mxu0 0.0
  %405 = vmatpush2.msra.mxu0 0.0
  %406 = vmatprep.subr.mxu0 0.0
  %407 = vmatpush2.msra.mxu0 0.0
  %408 = vmatprep.subr.mxu0 0.0
  %409 = vmatpush2.msra.mxu0 0.0
  %410 = vmatprep.subr.mxu0 0.0
  %411 = vmatpush2.msra.mxu0 0.0
  %412 = vmatprep.subr.mxu0 0.0
  %413 = vmatpush2.msra.mxu0 0.0
  %414 = vmatprep.subr.mxu0 0.0
  %415 = vmatpush2.msra.mxu0 0.0
  %416 = vmatprep.subr.mxu0 0.0
  %417 = vmatpush2.msra.mxu0 0.0
  %418 = vmatprep.subr.mxu0 0.0
  %419 = vmatpush2.msra.mxu0 0.0
  %420 = vmatprep.subr.mxu0 0.0
  %421 = vmatpush2.msra.mxu0 0.0
  %422 = vmatprep.subr.mxu0 0.0
  %423 = vmatpush2.msra.mxu0 0.0
  %424 = vmatprep.subr.mxu0 0.0
  %425 = vmatpush2.msra.mxu0 0.0
  %426 = vmatprep.subr.mxu0 0.0
  %427 = vmatpush2.msra.mxu0 0.0
  %428 = vmatprep.subr.mxu0 0.0
  %429 = vmatpush2.msra.mxu0 0.0
  %430 = vmatprep.mubr.f32.mxu0 0.0
  %431 = vmatmul.mubr.f32.gmra.mxu0 %v364
  %v432 = vpop.f32.mrf.mxu0
  %v433 = vadd.f32 %v362, %v432
  %v434 = vpop.f32.mrf.mxu0
  %435 = vdwg.mxu0
  %436 = vst [vmem:[%s7] sm:$0x1] %v433
  // Predicated region
  $region30: #{reward_forward.1} parent=0 // pred_check
    _
  $region31: #{reward_forward.1} parent=0 // pred_check_branch
    %438 = sbr.rel (0) target = $region33
  $region32: #{reward_forward.1} parent=0 // pred_region
    _
  $region33: #{reward_forward.1} parent=0 // pred_fallthru
    _
  // Predicated region
  $region34: #{reward_forward.1} parent=0 // pred_check
    _
  $region35: #{reward_forward.1} parent=0 // pred_check_branch
    %440 = sbr.rel (0) target = $region37
  $region36: #{reward_forward.1} parent=0 // pred_region
    _
  $region37: #{reward_forward.1} parent=0 // pred_fallthru
    _

</llo_original>
